<compile_context>
chip_gen: v7x
topology: tpu7x:2x2x1
jax: 0.10.0
libtpu: 0.0.40
codegen_flags: <defaults>
</compile_context>

<pallas_src>
import math

import jax
import jax.numpy as jnp
from jax.experimental import pallas as pl
from jax.experimental.pallas import tpu as pltpu

FRAME = 320          # HuBERT downsample_factor
D_MODEL = 32         # stand-in embedding dim (real model: 768)
N_CLUSTERS = 64      # codebook size (real kmeans: 1000)
MAX_TILE_ROWS = 512  # rows per grid step; per-tile VMEM stays small even at
                     # real dims (Cp=1024 -> ~5 MiB), well under v5e's 16 MiB
                     # scoped default and v7x's 64 MiB physical VMEM.


def _round_up(x, m):
    return pl.cdiv(x, m) * m


# ---------------------------------------------------------------------------
# Fused kernel (per row tile of unique frames):
#   scores  = frames @ Wc + bias_row
#     where Wc = W @ C^T and bias_row = b @ C^T - 0.5*||c||^2 (precomputed).
#   This is an affine, per-row-monotone transform of -cdist(embed, centers),
#   so the per-row argmax matches the reference.
#   cluster = first-occurrence argmax (matches torch.argmax tie behavior).
#   Cluster ids are emitted lane-dense as a (1, TILE) row via a tiny
#   (1, Cp) x (TILE, Cp)^T MXU matmul instead of a masked (TILE, 1) column
#   store.  Exact while Cp < 2^24 (ids are small integers carried in f32).
# ---------------------------------------------------------------------------
def _score_argmax_kernel(x_ref, wc_ref, bias_ref, clus_ref):
    # bf16 x bf16 matmul, f32 accumulate; f32 epilogue keeps the -1e30
    # sentinel for padded centers finite and losing.
    scores = jnp.dot(x_ref[...], wc_ref[...],
                     preferred_element_type=jnp.float32) + bias_ref[...]   # (T, Cp)
    c_pad = scores.shape[-1]

    max_val = jnp.max(scores, axis=-1, keepdims=True)                      # (T, 1)
    iota = jax.lax.broadcasted_iota(jnp.int32, scores.shape, 1)
    clusters_col = jnp.min(jnp.where(scores == max_val, iota, c_pad),
                           axis=-1, keepdims=True)                         # (T, 1)

    onehot = (iota == clusters_col).astype(jnp.float32)                    # (T, Cp)
    k_row = jax.lax.broadcasted_iota(jnp.int32, (1, c_pad), 1).astype(jnp.float32)
    ids = jax.lax.dot_general(k_row, onehot, (((1,), (1,)), ((), ())),
                              preferred_element_type=jnp.float32)          # (1, T)
    clus_ref[...] = ids.astype(jnp.int32)


def _assign_clusters(frames, w, b, centers):
    """frames: (N, FRAME) f32 -> cluster ids (N,) int32."""
    n, f = frames.shape
    n_clusters = centers.shape[0]

    c_pad = _round_up(n_clusters, 128)
    k_pad = _round_up(f, 128)                      # 320 -> 384: aligned K passes

    centers_f32 = centers.astype(jnp.float32)
    # Fold the (linear, per-frame) stand-in extractor into the score matmul.
    wc = jnp.dot(w.astype(jnp.float32), centers_f32.T)                     # (FRAME, C)
    bias = (jnp.dot(b.astype(jnp.float32), centers_f32.T)
            - 0.5 * jnp.sum(centers_f32 * centers_f32, axis=-1))           # (C,)

    wc_p = jnp.pad(wc, ((0, k_pad - f), (0, c_pad - n_clusters))
                   ).astype(jnp.bfloat16)                                   # bf16 MXU operand
    # Padded center columns get a -1e30 bias (f32) so they can never win.
    bias_p = jnp.pad(bias, (0, c_pad - n_clusters),
                     constant_values=-1e30).reshape(1, c_pad)

    # Tile sizing: multiples of 16 (bf16 sublane tile); >= 2 grid steps
    # whenever there is more than one sublane tile of rows so the "parallel"
    # axis shards across both v7x TensorCores; capped at MAX_TILE_ROWS.
    tile_n = min(MAX_TILE_ROWS, max(16, _round_up(pl.cdiv(n, 2), 16)))
    n_pad = _round_up(n, tile_n)
    num_tiles = n_pad // tile_n

    x = jnp.pad(frames.astype(jnp.float32),
                ((0, n_pad - n), (0, k_pad - f))).astype(jnp.bfloat16)

    # NOTE: Wc / bias have constant block index; at real sizes on v7x they
    # could be single-buffered (pipeline_mode=pl.Buffered(1)) to reclaim VMEM,
    # but at these operand sizes double-buffering costs < 1 MiB.
    clusters = pl.pallas_call(
        _score_argmax_kernel,
        out_shape=jax.ShapeDtypeStruct((num_tiles, 1, tile_n), jnp.int32),
        grid_spec=pltpu.PrefetchScalarGridSpec(
            num_scalar_prefetch=0,
            grid=(num_tiles,),
            in_specs=[
                pl.BlockSpec((tile_n, k_pad), lambda i: (i, 0)),
                pl.BlockSpec((k_pad, c_pad), lambda i: (0, 0)),
                pl.BlockSpec((1, c_pad), lambda i: (0, 0)),
            ],
            out_specs=pl.BlockSpec((None, 1, tile_n), lambda i: (i, 0, 0)),
        ),
        compiler_params=pltpu.CompilerParams(
            dimension_semantics=("parallel",)),
    )(x, wc_p, bias_p)

    return clusters.reshape(-1)[:n]


def _nearest_interp_indices(t_in):
    """Composed indices of F.interpolate(x8,'nearest') then (x0.2,'nearest').

    PyTorch nearest uses src = floor(dst * (1/scale_factor)), clamped to
    input_size-1; output_size = floor(input_size * scale_factor).
    """
    t_up = t_in * 8
    t_out = int(math.floor(t_up * 0.2))
    idx = []
    for j in range(t_out):
        up = min(int(math.floor(j * (1.0 / 0.2))), t_up - 1)          # second interp
        idx.append(min(int(math.floor(up * (1.0 / 8.0))), t_in - 1))  # first interp
    return t_out, jnp.asarray(idx, dtype=jnp.int32)


# ---------------------------------------------------------------------------
# Forward (flatten=True, input_sample_hz=None, seq_len_multiple_of=None).
# ---------------------------------------------------------------------------
def hubert_with_kmeans_forward(wav, w_proj, b_proj, cluster_centers):
    B, _ = wav.shape
    # F.pad(wav, (40, 40), 'reflect')  -- pure indexing glue.
    wav = jnp.pad(wav, ((0, 0), (40, 40)), mode="reflect")
    Lp = wav.shape[-1]
    T = Lp // FRAME

    T_out, idx = _nearest_interp_indices(T)

    # The stand-in extractor is per-frame, so the static nearest-interp gather
    # commutes with it: run the kernel over the T *unique* frames and apply
    # the (~1.6x upsampling) gather to the tiny cluster-id output afterwards.
    frames = wav[:, : T * FRAME].reshape(B * T, FRAME)
    clusters_u = _assign_clusters(frames, w_proj, b_proj,
                                  cluster_centers).reshape(B, T)

    clusters = jnp.take(clusters_u, idx, axis=1)                       # (B, T_out)
    # F.embedding(clusters, centers): exact codebook rows via a gather (kept
    # f32 / outside the kernel so it is bit-exact on every TPU generation).
    quantize = jnp.take(cluster_centers.astype(jnp.float32), clusters, axis=0)
    return clusters, quantize


if __name__ == "__main__":
    key = jax.random.PRNGKey(0)
    k1, k2, k3, k4 = jax.random.split(key, 4)

    B = 2
    L = 16 * FRAME - 80   # reflect-pad(40,40) makes exactly 16 frames -> T = 16
    wav = jax.random.normal(k1, (B, L), dtype=jnp.float32)
    w_proj = 0.05 * jax.random.normal(k2, (FRAME, D_MODEL), dtype=jnp.float32)
    b_proj = 0.05 * jax.random.normal(k3, (D_MODEL,), dtype=jnp.float32)
    cluster_centers = jax.random.normal(
        k4, (N_CLUSTERS, D_MODEL), dtype=jnp.float32)

    fwd = jax.jit(hubert_with_kmeans_forward)
    clusters, quantize = fwd(wav, w_proj, b_proj, cluster_centers)
    jax.block_until_ready((clusters, quantize))

    T_out = int(math.floor(16 * 8 * 0.2))  # 25 (torch: floor(size * scale))
    assert clusters.shape == (B, T_out), clusters.shape
    assert quantize.shape == (B, T_out, D_MODEL), quantize.shape
    assert clusters.dtype == jnp.int32
    assert quantize.dtype == jnp.float32
    assert int(clusters.min()) >= 0 and int(clusters.max()) < N_CLUSTERS
    # quantize must be exactly the codebook row of the assigned cluster.
    assert bool(jnp.allclose(quantize, cluster_centers[clusters]))
    print("KERNEL_OK")
</pallas_src>

<mosaic_0001>
module attributes {stable_mosaic.version = 11 : i64} {
  func.func @_score_argmax_kernel(%arg0: i32, %arg1: memref<16x384xbf16, #tpu.memory_space<vmem>>, %arg2: memref<384x128xbf16, #tpu.memory_space<vmem>>, %arg3: memref<1x128xf32, #tpu.memory_space<vmem>>, %arg4: memref<1x1x16xi32, #tpu.memory_space<vmem>>) attributes {dimension_semantics = [#tpu.dimension_semantics<parallel>], iteration_bounds = array<i64: 2>, scalar_prefetch = 0 : i64, scratch_operands = 0 : i64, tpu.core_type = #tpu.core_type<tc>, window_params = [{transform_indices = @transform_0, window_bounds = array<i64: 16, 384>}, {pipeline_mode = #tpu.pipeline_mode<synchronous>, transform_indices = @transform_1, window_bounds = array<i64: 384, 128>}, {pipeline_mode = #tpu.pipeline_mode<synchronous>, transform_indices = @transform_2, window_bounds = array<i64: 1, 128>}, {transform_indices = @transform_3, window_bounds = array<i64: 1, 1, 16>}]} {
    %c0 = arith.constant 0 : index
    %c0_0 = arith.constant 0 : index
    %0 = vector.load %arg1[%c0, %c0_0] : memref<16x384xbf16, #tpu.memory_space<vmem>>, vector<16x384xbf16>
    %c0_1 = arith.constant 0 : index
    %c0_2 = arith.constant 0 : index
    %1 = vector.load %arg2[%c0_1, %c0_2] : memref<384x128xbf16, #tpu.memory_space<vmem>>, vector<384x128xbf16>
    %cst = arith.constant dense<0.000000e+00> : vector<16x128xf32>
    %2 = tpu.matmul %0, %1, %cst {dimension_numbers = #tpu.dot_dimension_numbers<[1], [0], [0], [1], [0, 0, 1, 1], [], []>} : vector<16x384xbf16>, vector<384x128xbf16>, vector<16x128xf32> -> vector<16x128xf32>
    %c0_3 = arith.constant 0 : index
    %c0_4 = arith.constant 0 : index
    %3 = vector.load %arg3[%c0_3, %c0_4] : memref<1x128xf32, #tpu.memory_space<vmem>>, vector<1x128xf32>
    %4 = vector.broadcast %3 : vector<1x128xf32> to vector<16x128xf32>
    %5 = arith.addf %2, %4 : vector<16x128xf32>
    %cst_5 = arith.constant dense<0xFF800000> : vector<16xf32>
    %6 = vector.multi_reduction <maximumf>, %5, %cst_5 [1] : vector<16x128xf32> to vector<16xf32>
    %7 = vector.shape_cast %6 : vector<16xf32> to vector<16x1xf32>
    %8 = tpu.iota {dimensions = array<i32: 1>} : vector<16x128xi32>
    %9 = vector.broadcast %7 : vector<16x1xf32> to vector<16x128xf32>
    %10 = arith.cmpf oeq, %5, %9 : vector<16x128xf32>
    %c128_i32 = arith.constant 128 : i32
    %11 = vector.broadcast %c128_i32 : i32 to vector<16x128xi32>
    %12 = arith.select %10, %8, %11 : vector<16x128xi1>, vector<16x128xi32>
    %cst_6 = arith.constant dense<2147483647> : vector<16xi32>
    %13 = vector.multi_reduction <minsi>, %12, %cst_6 [1] : vector<16x128xi32> to vector<16xi32>
    %14 = vector.shape_cast %13 : vector<16xi32> to vector<16x1xi32>
    %15 = vector.broadcast %14 : vector<16x1xi32> to vector<16x128xi32>
    %16 = arith.cmpi eq, %8, %15 : vector<16x128xi32>
    %17 = arith.extui %16 : vector<16x128xi1> to vector<16x128xi32>
    %18 = arith.sitofp %17 : vector<16x128xi32> to vector<16x128xf32>
    %19 = tpu.iota {dimensions = array<i32: 1>} : vector<1x128xi32>
    %20 = arith.sitofp %19 : vector<1x128xi32> to vector<1x128xf32>
    %cst_7 = arith.constant dense<0.000000e+00> : vector<1x16xf32>
    %21 = tpu.matmul %20, %18, %cst_7 {dimension_numbers = #tpu.dot_dimension_numbers<[1], [1], [0], [0], [0, 0, 1, 0], [], []>} : vector<1x128xf32>, vector<16x128xf32>, vector<1x16xf32> -> vector<1x16xf32>
    %22 = arith.fptosi %21 : vector<1x16xf32> to vector<1x16xi32>
    %c0_8 = arith.constant 0 : index
    %c0_9 = arith.constant 0 : index
    %c0_10 = arith.constant 0 : index
    %23 = vector.load %arg4[%c0_8, %c0_9, %c0_10] : memref<1x1x16xi32, #tpu.memory_space<vmem>>, vector<1x1x16xi32>
    %24 = vector.shape_cast %23 : vector<1x1x16xi32> to vector<1x16xi32>
    %25 = vector.shape_cast %22 : vector<1x16xi32> to vector<1x1x16xi32>
    tpu.vector_store %arg4[%c0_8, %c0_9, %c0_10], %25 {strides = array<i32>} : memref<1x1x16xi32, #tpu.memory_space<vmem>>, vector<1x1x16xi32>,
    return
  }
  func.func @transform_0(%arg0: i32) -> (i32, i32) {
    %c0_i32 = arith.constant 0 : i32
    %c0_i32_0 = arith.constant 0 : i32
    return %arg0, %c0_i32 : i32, i32
  }
  func.func @transform_1(%arg0: i32) -> (i32, i32) {
    %c0_i32 = arith.constant 0 : i32
    %c0_i32_0 = arith.constant 0 : i32
    %c0_i32_1 = arith.constant 0 : i32
    return %c0_i32, %c0_i32_0 : i32, i32
  }
  func.func @transform_2(%arg0: i32) -> (i32, i32) {
    %c0_i32 = arith.constant 0 : i32
    %c0_i32_0 = arith.constant 0 : i32
    %c0_i32_1 = arith.constant 0 : i32
    return %c0_i32, %c0_i32_0 : i32, i32
  }
  func.func @transform_3(%arg0: i32) -> (i32, i32, i32) {
    %c0_i32 = arith.constant 0 : i32
    %c0_i32_0 = arith.constant 0 : i32
    %c0_i32_1 = arith.constant 0 : i32
    return %arg0, %c0_i32, %c0_i32_0 : i32, i32, i32
  }
}

</mosaic_0001>

<llo_original>
// kernel: hubert_with_kmeans_forward.1
$region0: #{hubert_with_kmeans_forward.1}
  #allocation0 [shape = 'u32[]', space=smem, size = 0x4, offset = 0x4, fixed_abs, tag = 'smem constant byte address 0x4 - core index']
  #allocation1 [shape = 'u32[144,128]{1,0:T(1,128)}', space=vmem, size = 0x12000, scoped, tag = 'internal scratch']
  %s0 = inlined_call_operand.vmem [shape: bf16[32,384], index: 0, kind: input, shape index: {}]
  %s1 = inlined_call_operand.vmem [shape: bf16[384,128], index: 1, kind: input, shape index: {}]
  %s2 = inlined_call_operand.vmem [shape: f32[1,128], index: 2, kind: input, shape index: {}]
  %s3 = inlined_call_operand.vmem [shape: s32[2,1,16], index: 3, kind: output, shape index: {}]
  %s4 = sld [smem:[#allocation0]]
  $region45: #{hubert_with_kmeans_forward.1} parent=0
    _
  %s6 = ssub.s32 1, %s4
  %s7 = scalar_select 0, %s6, %s4
  loop: start=0, step=1, limit=4
  $region2: #{hubert_with_kmeans_forward.1} parent=0 // loop_pre_header
    _
  $region3: #{hubert_with_kmeans_forward.1} parent=0 // loop_header
    %s9 = sphi 0, %s13
    %p10 = scmp.ge.s32.totalorder %s9, 4
    %s19 = sphi 0, %s21
    %s22 = sphi 0, %s19
    %s23 = sphi 0, %s22
    %s39 = sphi 0, %s23
    %s43 = sphi 0, %s43
    %s45 = sphi 0, %s43
    %s46 = sphi 0, %s45
    %s60 = sphi 0, %s46
    %s64 = sphi 0, %s64
    %s66 = sphi 0, %s64
    %s67 = sphi 0, %s66
    %s81 = sphi 0, %s67
    %s87 = sphi 0, %s89
    %s90 = sphi 0, %s87
    %s91 = sphi 0, %s90
    %s107 = sphi 0, %s91
  $region4: #{hubert_with_kmeans_forward.1} parent=0 // loop_header_branch
    %12 = sbr.rel (%p10) target = $region8
  $region5: #{hubert_with_kmeans_forward.1} parent=0 // loop_body
    %s14 = ssub.s32 %s9, 1
    %s15 = ssub.s32 %s9, 2
    %s16 = sadd.s32 %s9, 1
    %s17 = ssub.s32 %s9, %s16
    %p18 = scmp.eq.s32.totalorder %s17, 0
    %s20 = sadd.s32 %s19, 1
    %s21 = scalar_select %p18, %s19, %s20
    %p24 = pneg %p18
    %p25 = scmp.eq.s32.totalorder %s9, 1
    %p26 = por %p24, %p25
    %p27 = scmp.ne.s32.totalorder %s19, %s22
    %p28 = scmp.eq.s32.totalorder %s9, 0
    %p29 = por %p27, %p28
    %p30 = scmp.ne.s32.totalorder %s19, %s22
    %p31 = scmp.eq.s32.totalorder %s14, 1
    %p32 = por %p30, %p31
    %p33 = scmp.ne.s32.totalorder %s22, %s23
    %p34 = scmp.eq.s32.totalorder %s14, 0
    %p35 = por %p33, %p34
    %p36 = scmp.ne.s32.totalorder %s22, %s23
    %p37 = scmp.eq.s32.totalorder %s15, 1
    %p38 = por %p36, %p37
    %p40 = scmp.ne.s32.totalorder %s23, %s39
    %p41 = scmp.eq.s32.totalorder %s15, 0
    %p42 = por %p40, %p41
    %s44 = sadd.s32 %s43, 1
    %p47 = scmp.eq.s32.totalorder %s9, 1
    %p48 = scmp.ne.s32.totalorder %s43, %s45
    %p49 = scmp.eq.s32.totalorder %s9, 0
    %p50 = por %p48, %p49
    %p51 = scmp.ne.s32.totalorder %s43, %s45
    %p52 = scmp.eq.s32.totalorder %s14, 1
    %p53 = por %p51, %p52
    %p54 = scmp.ne.s32.totalorder %s45, %s46
    %p55 = scmp.eq.s32.totalorder %s14, 0
    %p56 = por %p54, %p55
    %p57 = scmp.ne.s32.totalorder %s45, %s46
    %p58 = scmp.eq.s32.totalorder %s15, 1
    %p59 = por %p57, %p58
    %p61 = scmp.ne.s32.totalorder %s46, %s60
    %p62 = scmp.eq.s32.totalorder %s15, 0
    %p63 = por %p61, %p62
    %s65 = sadd.s32 %s64, 1
    %p68 = scmp.eq.s32.totalorder %s9, 1
    %p69 = scmp.ne.s32.totalorder %s64, %s66
    %p70 = scmp.eq.s32.totalorder %s9, 0
    %p71 = por %p69, %p70
    %p72 = scmp.ne.s32.totalorder %s64, %s66
    %p73 = scmp.eq.s32.totalorder %s14, 1
    %p74 = por %p72, %p73
    %p75 = scmp.ne.s32.totalorder %s66, %s67
    %p76 = scmp.eq.s32.totalorder %s14, 0
    %p77 = por %p75, %p76
    %p78 = scmp.ne.s32.totalorder %s66, %s67
    %p79 = scmp.eq.s32.totalorder %s15, 1
    %p80 = por %p78, %p79
    %p82 = scmp.ne.s32.totalorder %s67, %s81
    %p83 = scmp.eq.s32.totalorder %s15, 0
    %p84 = por %p82, %p83
    %s85 = ssub.s32 %s9, %s16
    %p86 = scmp.eq.s32.totalorder %s85, 0
    %s88 = sadd.s32 %s87, 1
    %s89 = scalar_select %p86, %s87, %s88
    %p92 = pneg %p86
    %p93 = scmp.eq.s32.totalorder %s9, 1
    %p94 = por %p92, %p93
    %p95 = scmp.ne.s32.totalorder %s87, %s90
    %p96 = scmp.eq.s32.totalorder %s9, 0
    %p97 = por %p95, %p96
    %p98 = scmp.ne.s32.totalorder %s87, %s90
    %p99 = scmp.eq.s32.totalorder %s14, 1
    %p100 = por %p98, %p99
    %p101 = scmp.ne.s32.totalorder %s90, %s91
    %p102 = scmp.eq.s32.totalorder %s14, 0
    %p103 = por %p101, %p102
    %p104 = scmp.ne.s32.totalorder %s90, %s91
    %p105 = scmp.eq.s32.totalorder %s15, 1
    %p106 = por %p104, %p105
    %p108 = scmp.ne.s32.totalorder %s91, %s107
    %p109 = scmp.eq.s32.totalorder %s15, 0
    %p110 = por %p108, %p109
    %p111 = scmp.le.s32.totalorder 1, %s9
    %p112 = scmp.lt.s32.totalorder %s9, 3
    %p113 = pnand %p111, %p112
    %p114 = pneg %p113
    // Predicated region
    $region9: #{hubert_with_kmeans_forward.1} parent=5 // pred_check
      _
    $region10: #{hubert_with_kmeans_forward.1} parent=5 // pred_check_branch
      %116 = sbr.rel (%p113) target = $region12
    $region11: #{hubert_with_kmeans_forward.1} parent=5 // pred_region
      %s117 = ssub.s32 %s9, 1
      // Predicated region
      $region13: #{hubert_with_kmeans_forward.1} parent=11 // pred_check
        %p118 = pneg %p56
      $region14: #{hubert_with_kmeans_forward.1} parent=11 // pred_check_branch
        %120 = sbr.rel (%p118) target = $region16
      $region15: #{hubert_with_kmeans_forward.1} parent=11 // pred_region
        _
      $region16: #{hubert_with_kmeans_forward.1} parent=11 // pred_fallthru
        _
      // Predicated region
      $region17: #{hubert_with_kmeans_forward.1} parent=11 // pred_check
        %p121 = pneg %p77
      $region18: #{hubert_with_kmeans_forward.1} parent=11 // pred_check_branch
        %123 = sbr.rel (%p121) target = $region20
      $region19: #{hubert_with_kmeans_forward.1} parent=11 // pred_region
        _
      $region20: #{hubert_with_kmeans_forward.1} parent=11 // pred_fallthru
        _
    $region12: #{hubert_with_kmeans_forward.1} parent=5 // pred_fallthru
      _
    %p124 = scmp.lt.s32.totalorder %s9, 2
    // Predicated region
    $region21: #{hubert_with_kmeans_forward.1} parent=5 // pred_check
      %p125 = pneg %p124
    $region22: #{hubert_with_kmeans_forward.1} parent=5 // pred_check_branch
      %127 = sbr.rel (%p125) target = $region24
    $region23: #{hubert_with_kmeans_forward.1} parent=5 // pred_region
      // Predicated region
      $region25: #{hubert_with_kmeans_forward.1} parent=23 // pred_check
        %p128 = pneg %p29
      $region26: #{hubert_with_kmeans_forward.1} parent=23 // pred_check_branch
        %130 = sbr.rel (%p128) target = $region28
      $region27: #{hubert_with_kmeans_forward.1} parent=23 // pred_region
        %s131 = smul.u32 2, %s9
        %p132 = scmp.lt.s32.totalorder %s131, 3
        %s133 = scalar_select %p132, %s131, 3
        %s134 = smul.addr %s133, 3
        %s135 = smul.addr %s134, 4
        %s136 = scalar_lea.vmem %s0, %s135
        %s137 = smul.u32 2, %s9
      $region28: #{hubert_with_kmeans_forward.1} parent=23 // pred_fallthru
        _
    $region24: #{hubert_with_kmeans_forward.1} parent=5 // pred_fallthru
      _
    %p138 = scmp.le.s32.totalorder 1, %s9
    %p139 = scmp.lt.s32.totalorder %s9, 3
    %p140 = pnand %p138, %p139
    %p141 = pneg %p140
    // Predicated region
    $region29: #{hubert_with_kmeans_forward.1} parent=5 // pred_check
      _
    $region30: #{hubert_with_kmeans_forward.1} parent=5 // pred_check_branch
      %143 = sbr.rel (%p140) target = $region32
    $region31: #{hubert_with_kmeans_forward.1} parent=5 // pred_region
      %s144 = ssub.s32 %s9, 1
      %s145 = smul.u32 2, %s14
      %p146 = scmp.lt.s32.totalorder %s145, 3
      %s147 = scalar_select %p146, %s145, 3
      %s148 = smul.addr %s147, 3
      %s149 = smul.addr %s148, 4
      %s150 = scalar_lea.vmem %s0, %s149
      %p151 = pneg %p35
      %p152 = pneg %p32
      %p153 = pneg %p56
      %p154 = pneg %p53
      %p155 = pneg %p77
      %p156 = pneg %p74
      %p157 = pneg %p103
      %p158 = pneg %p100
      %p159 = scmp.lt.s32.totalorder %s14, 1
      %s160 = scalar_select %p159, %s14, 1
      %s161 = scalar_lea.vmem %s3, %s160
      %s162 = smul.u32 2, %s14
      %p163 = scmp.lt.s32.totalorder %s162, 3
      %s164 = scalar_select %p163, %s162, 3
      %s165 = smul.addr %s164, 3
      %s166 = smul.addr %s165, 4
      %s167 = scalar_lea.vmem %s0, %s166
      %s168 = smul.u32 2, %s14
      %p169 = scmp.lt.s32.totalorder %s14, 1
      %s170 = scalar_select %p169, %s14, 1
      %s171 = scalar_lea.vmem %s3, %s170
      %v173 = vld [vmem:[%s167] sm:$0xff]
      %v174 = vld [vmem:[%s167 + $0x8] sm:$0xf]
      %v175 = vld [vmem:[%s167 + $0xc] sm:$0xff]
      %v176 = vld [vmem:[%s167 + $0x14] sm:$0xf]
      %v177 = vld [vmem:[%s1] sm:$0xf]
      %v178 = vld [vmem:[%s1 + $0x4] sm:$0xf]
      %v179 = vld [vmem:[%s1 + $0x8] sm:$0xf]
      %v180 = vld [vmem:[%s1 + $0xc] sm:$0xf]
      %v181 = vld [vmem:[%s1 + $0x10] sm:$0xf]
      %v182 = vld [vmem:[%s1 + $0x14] sm:$0xf]
      %v183 = vld [vmem:[%s1 + $0x18] sm:$0xf]
      %v184 = vld [vmem:[%s1 + $0x1c] sm:$0xf]
      %v185 = vld [vmem:[%s1 + $0x20] sm:$0xf]
      %v186 = vld [vmem:[%s1 + $0x24] sm:$0xf]
      %v187 = vld [vmem:[%s1 + $0x28] sm:$0xf]
      %v188 = vld [vmem:[%s1 + $0x2c] sm:$0xf]
      %v189 = vld [vmem:[%s1 + $0x30] sm:$0xf]
      %v190 = vld [vmem:[%s1 + $0x34] sm:$0xf]
      %v191 = vld [vmem:[%s1 + $0x38] sm:$0xf]
      %v192 = vld [vmem:[%s1 + $0x3c] sm:$0xf]
      %v193 = vld [vmem:[%s1 + $0x40] sm:$0xf]
      %v194 = vld [vmem:[%s1 + $0x44] sm:$0xf]
      %v195 = vld [vmem:[%s1 + $0x48] sm:$0xf]
      %v196 = vld [vmem:[%s1 + $0x4c] sm:$0xf]
      %v197 = vld [vmem:[%s1 + $0x50] sm:$0xf]
      %v198 = vld [vmem:[%s1 + $0x54] sm:$0xf]
      %v199 = vld [vmem:[%s1 + $0x58] sm:$0xf]
      %v200 = vld [vmem:[%s1 + $0x5c] sm:$0xf]
      %v201 = vld [vmem:[%s1 + $0x60] sm:$0xf]
      %v202 = vld [vmem:[%s1 + $0x64] sm:$0xf]
      %v203 = vld [vmem:[%s1 + $0x68] sm:$0xf]
      %v204 = vld [vmem:[%s1 + $0x6c] sm:$0xf]
      %v205 = vld [vmem:[%s1 + $0x70] sm:$0xf]
      %v206 = vld [vmem:[%s1 + $0x74] sm:$0xf]
      %v207 = vld [vmem:[%s1 + $0x78] sm:$0xf]
      %v208 = vld [vmem:[%s1 + $0x7c] sm:$0xf]
      %v209 = vld [vmem:[%s1 + $0x80] sm:$0xf]
      %v210 = vld [vmem:[%s1 + $0x84] sm:$0xf]
      %v211 = vld [vmem:[%s1 + $0x88] sm:$0xf]
      %v212 = vld [vmem:[%s1 + $0x8c] sm:$0xf]
      %v213 = vld [vmem:[%s1 + $0x90] sm:$0xf]
      %v214 = vld [vmem:[%s1 + $0x94] sm:$0xf]
      %v215 = vld [vmem:[%s1 + $0x98] sm:$0xf]
      %v216 = vld [vmem:[%s1 + $0x9c] sm:$0xf]
      %v217 = vld [vmem:[%s1 + $0xa0] sm:$0xf]
      %v218 = vld [vmem:[%s1 + $0xa4] sm:$0xf]
      %v219 = vld [vmem:[%s1 + $0xa8] sm:$0xf]
      %v220 = vld [vmem:[%s1 + $0xac] sm:$0xf]
      %v221 = vld [vmem:[%s1 + $0xb0] sm:$0xf]
      %v222 = vld [vmem:[%s1 + $0xb4] sm:$0xf]
      %v223 = vld [vmem:[%s1 + $0xb8] sm:$0xf]
      %v224 = vld [vmem:[%s1 + $0xbc] sm:$0xf]
      %v225 = vld [vmem:[%s2] sm:$0x1]
      %v227 = vlaneseq
      %v228 = vshrl.u32 %v227, 7
      %v229 = vsub.s32 0, %v228
      %v230 = vrot.slane %v225, %v229
      %v236 = vunpack.c.l.b16 %v173
      %v237 = vunpack.c.h.b16 %v173
      %v238 = vunpack.c.l.b16 %v174
      %v239 = vunpack.c.l.b16 %v175
      %v240 = vunpack.c.h.b16 %v175
      %v241 = vunpack.c.l.b16 %v176
      %v242 = vpack.c.b16 %v239, %v236
      %v243 = vpack.c.b16 %v240, %v237
      %v244 = vpack.c.b16 %v241, %v238
      %v296 = vunpack.c.l.b16 %v177
      %v297 = vunpack.c.l.b16 %v178
      %v298 = vunpack.c.l.b16 %v179
      %v299 = vunpack.c.l.b16 %v180
      %v300 = vunpack.c.l.b16 %v181
      %v301 = vunpack.c.l.b16 %v182
      %v302 = vunpack.c.l.b16 %v183
      %v303 = vunpack.c.l.b16 %v184
      %v304 = vunpack.c.l.b16 %v185
      %v305 = vunpack.c.l.b16 %v186
      %v306 = vunpack.c.l.b16 %v187
      %v307 = vunpack.c.l.b16 %v188
      %v308 = vunpack.c.l.b16 %v189
      %v309 = vunpack.c.l.b16 %v190
      %v310 = vunpack.c.l.b16 %v191
      %v311 = vunpack.c.l.b16 %v192
      %v312 = vunpack.c.l.b16 %v193
      %v313 = vunpack.c.l.b16 %v194
      %v314 = vunpack.c.l.b16 %v195
      %v315 = vunpack.c.l.b16 %v196
      %v316 = vunpack.c.l.b16 %v197
      %v317 = vunpack.c.l.b16 %v198
      %v318 = vunpack.c.l.b16 %v199
      %v319 = vunpack.c.l.b16 %v200
      %v320 = vunpack.c.l.b16 %v201
      %v321 = vunpack.c.l.b16 %v202
      %v322 = vunpack.c.l.b16 %v203
      %v323 = vunpack.c.l.b16 %v204
      %v324 = vunpack.c.l.b16 %v205
      %v325 = vunpack.c.l.b16 %v206
      %v326 = vunpack.c.l.b16 %v207
      %v327 = vunpack.c.l.b16 %v208
      %v328 = vunpack.c.l.b16 %v209
      %v329 = vunpack.c.l.b16 %v210
      %v330 = vunpack.c.l.b16 %v211
      %v331 = vunpack.c.l.b16 %v212
      %v332 = vunpack.c.l.b16 %v213
      %v333 = vunpack.c.l.b16 %v214
      %v334 = vunpack.c.l.b16 %v215
      %v335 = vunpack.c.l.b16 %v216
      %v336 = vunpack.c.l.b16 %v217
      %v337 = vunpack.c.l.b16 %v218
      %v338 = vunpack.c.l.b16 %v219
      %v339 = vunpack.c.l.b16 %v220
      %v340 = vunpack.c.l.b16 %v221
      %v341 = vunpack.c.l.b16 %v222
      %v342 = vunpack.c.l.b16 %v223
      %v343 = vunpack.c.l.b16 %v224
      %v344 = vpack.c.b16 %v297, %v296
      %v345 = vpack.c.b16 %v299, %v298
      %v346 = vpack.c.b16 %v301, %v300
      %v347 = vpack.c.b16 %v303, %v302
      %v348 = vpack.c.b16 %v305, %v304
      %v349 = vpack.c.b16 %v307, %v306
      %v350 = vpack.c.b16 %v309, %v308
      %v351 = vpack.c.b16 %v311, %v310
      %v352 = vpack.c.b16 %v313, %v312
      %v353 = vpack.c.b16 %v315, %v314
      %v354 = vpack.c.b16 %v317, %v316
      %v355 = vpack.c.b16 %v319, %v318
      %v356 = vpack.c.b16 %v321, %v320
      %v357 = vpack.c.b16 %v323, %v322
      %v358 = vpack.c.b16 %v325, %v324
      %v359 = vpack.c.b16 %v327, %v326
      %v360 = vpack.c.b16 %v329, %v328
      %v361 = vpack.c.b16 %v331, %v330
      %v362 = vpack.c.b16 %v333, %v332
      %v363 = vpack.c.b16 %v335, %v334
      %v364 = vpack.c.b16 %v337, %v336
      %v365 = vpack.c.b16 %v339, %v338
      %v366 = vpack.c.b16 %v341, %v340
      %v367 = vpack.c.b16 %v343, %v342
      %392 = vmatprep.subr.bf16.mxu0 0
      %393 = vmatpush1.bf16.msra.mxu0 %v344
      %394 = vmatprep.subr.bf16.mxu0 0
      %395 = vmatpush1.bf16.msra.mxu0 %v345
      %396 = vmatprep.subr.bf16.mxu0 0
      %397 = vmatpush1.bf16.msra.mxu0 %v346
      %398 = vmatprep.subr.bf16.mxu0 0
      %399 = vmatpush1.bf16.msra.mxu0 %v347
      %400 = vmatprep.subr.bf16.mxu0 0
      %401 = vmatpush1.bf16.msra.mxu0 %v348
      %402 = vmatprep.subr.bf16.mxu0 0
      %403 = vmatpush1.bf16.msra.mxu0 %v349
      %404 = vmatprep.subr.bf16.mxu0 0
      %405 = vmatpush1.bf16.msra.mxu0 %v350
      %406 = vmatprep.subr.bf16.mxu0 0
      %407 = vmatpush1.bf16.msra.mxu0 %v351
      %408 = vmatprep.subr.bf16.mxu0 0
      %409 = vmatpush1.bf16.msra.mxu0 %v352
      %410 = vmatprep.subr.bf16.mxu0 0
      %411 = vmatpush1.bf16.msra.mxu0 %v353
      %412 = vmatprep.subr.bf16.mxu0 0
      %413 = vmatpush1.bf16.msra.mxu0 %v354
      %414 = vmatprep.subr.bf16.mxu0 0
      %415 = vmatpush1.bf16.msra.mxu0 %v355
      %416 = vmatprep.subr.bf16.mxu0 0
      %417 = vmatpush1.bf16.msra.mxu0 %v356
      %418 = vmatprep.subr.bf16.mxu0 0
      %419 = vmatpush1.bf16.msra.mxu0 %v357
      %420 = vmatprep.subr.bf16.mxu0 0
      %421 = vmatpush1.bf16.msra.mxu0 %v358
      %422 = vmatprep.subr.bf16.mxu0 0
      %423 = vmatpush1.bf16.msra.mxu0 %v359
      %424 = vmatprep.mubr.bf16.mxu0 %v243
      %425 = vmatmul.mubr.bf16.gmra.mrb[0].mxu0 %v242
      %v426 = vpop.f32.mrb[0].mxu0
      %v427 = vadd.f32 %v230, %v426
      %v428 = vpop.f32.mrb[0].mxu0
      %v429 = vpop.f32.mrb[0].mxu0
      %v430 = vadd.f32 %v230, %v429
      %v431 = vpop.f32.mrb[0].mxu0
      %432 = vdwg.mxu0
      %433 = vmatprep.subr.bf16.mxu0 0
      %434 = vmatpush1.bf16.msra.mxu0 %v360
      %435 = vmatprep.subr.bf16.mxu0 0
      %436 = vmatpush1.bf16.msra.mxu0 %v361
      %437 = vmatprep.subr.bf16.mxu0 0
      %438 = vmatpush1.bf16.msra.mxu0 %v362
      %439 = vmatprep.subr.bf16.mxu0 0
      %440 = vmatpush1.bf16.msra.mxu0 %v363
      %441 = vmatprep.subr.bf16.mxu0 0
      %442 = vmatpush1.bf16.msra.mxu0 %v364
      %443 = vmatprep.subr.bf16.mxu0 0
      %444 = vmatpush1.bf16.msra.mxu0 %v365
      %445 = vmatprep.subr.bf16.mxu0 0
      %446 = vmatpush1.bf16.msra.mxu0 %v366
      %447 = vmatprep.subr.bf16.mxu0 0
      %448 = vmatpush1.bf16.msra.mxu0 %v367
      %449 = vmatprep.subr.bf16.mxu0 0
      %450 = vmatpush1.bf16.msra.mxu0 0
      %451 = vmatprep.subr.bf16.mxu0 0
      %452 = vmatpush1.bf16.msra.mxu0 0
      %453 = vmatprep.subr.bf16.mxu0 0
      %454 = vmatpush1.bf16.msra.mxu0 0
      %455 = vmatprep.subr.bf16.mxu0 0
      %456 = vmatpush1.bf16.msra.mxu0 0
      %457 = vmatprep.subr.bf16.mxu0 0
      %458 = vmatpush1.bf16.msra.mxu0 0
      %459 = vmatprep.subr.bf16.mxu0 0
      %460 = vmatpush1.bf16.msra.mxu0 0
      %461 = vmatprep.subr.bf16.mxu0 0
      %462 = vmatpush1.bf16.msra.mxu0 0
      %463 = vmatprep.subr.bf16.mxu0 0
      %464 = vmatpush1.bf16.msra.mxu0 0
      %465 = vmatprep.mubr.bf16.mxu0 0
      %466 = vmatmul.mubr.bf16.gmra.mrb[0].mxu0 %v244
      %v467 = vpop.f32.mrb[0].mxu0
      %v468 = vadd.f32 %v427, %v467
      %v469 = vpop.f32.mrb[0].mxu0
      %v470 = vpop.f32.mrb[0].mxu0
      %v471 = vadd.f32 %v430, %v470
      %v472 = vpop.f32.mrb[0].mxu0
      %473 = vdwg.mxu0
      %474 = vmax.xlane.f32.xlu0 %v468
      %v475 = vpop.xlane.xlu0 %474
      %476 = vmax.xlane.f32.xlu0 %v471
      %v477 = vpop.xlane.xlu0 %476
      %v478 = vlaneseq
      %v479 = vand.u32 %v478, 127
      %vm480 = vcmp.eq.f32.partialorder %v468, %v475
      %vm481 = vcmp.eq.f32.partialorder %v471, %v477
      %v482 = vsel %vm480, %v479, 128
      %v483 = vsel %vm481, %v479, 128
      %v484 = vand.u32 %v482, 65535
      %v485 = vshra.s32 %v482, 16
      %v486 = vcvt.s32.f32 %v484
      %v487 = vcvt.s32.f32 %v485
      %488 = vmin.xlane.f32.xlu0 %v487
      %v489 = vpop.xlane.xlu0 %488
      %vm490 = vcmp.eq.f32.partialorder %v487, %v489
      %v491 = vsel %vm490, %v486, inf
      %492 = vmin.xlane.f32.xlu0 %v491
      %v493 = vpop.xlane.xlu0 %492
      %v494 = vcvt.f32.s32 %v493
      %v495 = vcvt.f32.s32 %v489
      %v496 = vshll.u32 %v495, 16
      %v497 = vadd.s32 %v496, %v494
      %v498 = vand.u32 %v483, 65535
      %v499 = vshra.s32 %v483, 16
      %v500 = vcvt.s32.f32 %v498
      %v501 = vcvt.s32.f32 %v499
      %502 = vmin.xlane.f32.xlu0 %v501
      %v503 = vpop.xlane.xlu0 %502
      %vm504 = vcmp.eq.f32.partialorder %v501, %v503
      %v505 = vsel %vm504, %v500, inf
      %506 = vmin.xlane.f32.xlu0 %v505
      %v507 = vpop.xlane.xlu0 %506
      %v508 = vcvt.f32.s32 %v507
      %v509 = vcvt.f32.s32 %v503
      %v510 = vshll.u32 %v509, 16
      %v511 = vadd.s32 %v510, %v508
      %vm512 = vcmp.eq.s32.totalorder %v479, %v497
      %vm513 = vcmp.eq.s32.totalorder %v479, %v511
      %v514 = vsel %vm512, 1, 0
      %v515 = vsel %vm513, 1, 0
      %v516 = vcvt.s32.f32 %v514
      %v517 = vcvt.s32.f32 %v515
      %v518 = vcvt.s32.f32 %v479
      %519 = vmatprep.subr.mxu0 0.0
      %520 = vmatpush1.xpose.msra.mxu0 %v516
      %521 = vmatprep.subr.mxu0 0.0
      %522 = vmatpush1.xpose.msra.mxu0 %v517
      %523 = vmatprep.subr.mxu0 0.0
      %524 = vmatpush1.xpose.msra.mxu0 0.0
      %525 = vmatprep.subr.mxu0 0.0
      %526 = vmatpush1.xpose.msra.mxu0 0.0
      %527 = vmatprep.subr.mxu0 0.0
      %528 = vmatpush1.xpose.msra.mxu0 0.0
      %529 = vmatprep.subr.mxu0 0.0
      %530 = vmatpush1.xpose.msra.mxu0 0.0
      %531 = vmatprep.subr.mxu0 0.0
      %532 = vmatpush1.xpose.msra.mxu0 0.0
      %533 = vmatprep.subr.mxu0 0.0
      %534 = vmatpush1.xpose.msra.mxu0 0.0
      %535 = vmatprep.subr.mxu0 0.0
      %536 = vmatpush1.xpose.msra.mxu0 0.0
      %537 = vmatprep.subr.mxu0 0.0
      %538 = vmatpush1.xpose.msra.mxu0 0.0
      %539 = vmatprep.subr.mxu0 0.0
      %540 = vmatpush1.xpose.msra.mxu0 0.0
      %541 = vmatprep.subr.mxu0 0.0
      %542 = vmatpush1.xpose.msra.mxu0 0.0
      %543 = vmatprep.subr.mxu0 0.0
      %544 = vmatpush1.xpose.msra.mxu0 0.0
      %545 = vmatprep.subr.mxu0 0.0
      %546 = vmatpush1.xpose.msra.mxu0 0.0
      %547 = vmatprep.subr.mxu0 0.0
      %548 = vmatpush1.xpose.msra.mxu0 0.0
      %549 = vmatprep.subr.mxu0 0.0
      %550 = vmatpush1.xpose.msra.mxu0 0.0
      %551 = vmatprep.subr.mxu0 0.0
      %552 = vmatpush1.xpose.msra.mxu0 0.0
      %553 = vmatprep.subr.mxu0 0.0
      %554 = vmatpush1.xpose.msra.mxu0 0.0
      %555 = vmatprep.subr.mxu0 0.0
      %556 = vmatpush1.xpose.msra.mxu0 0.0
      %557 = vmatprep.subr.mxu0 0.0
      %558 = vmatpush1.xpose.msra.mxu0 0.0
      %559 = vmatprep.subr.mxu0 0.0
      %560 = vmatpush1.xpose.msra.mxu0 0.0
      %561 = vmatprep.subr.mxu0 0.0
      %562 = vmatpush1.xpose.msra.mxu0 0.0
      %563 = vmatprep.subr.mxu0 0.0
      %564 = vmatpush1.xpose.msra.mxu0 0.0
      %565 = vmatprep.subr.mxu0 0.0
      %566 = vmatpush1.xpose.msra.mxu0 0.0
      %567 = vmatprep.subr.mxu0 0.0
      %568 = vmatpush1.xpose.msra.mxu0 0.0
      %569 = vmatprep.subr.mxu0 0.0
      %570 = vmatpush1.xpose.msra.mxu0 0.0
      %571 = vmatprep.subr.mxu0 0.0
      %572 = vmatpush1.xpose.msra.mxu0 0.0
      %573 = vmatprep.subr.mxu0 0.0
      %574 = vmatpush1.xpose.msra.mxu0 0.0
      %575 = vmatprep.subr.mxu0 0.0
      %576 = vmatpush1.xpose.msra.mxu0 0.0
      %577 = vmatprep.subr.mxu0 0.0
      %578 = vmatpush1.xpose.msra.mxu0 0.0
      %579 = vmatprep.subr.mxu0 0.0
      %580 = vmatpush1.xpose.msra.mxu0 0.0
      %581 = vmatprep.subr.mxu0 0.0
      %582 = vmatpush1.xpose.msra.mxu0 0.0
      %583 = vmatprep.mubr.f32.mxu0 0.0
      %584 = vmatmul.mubr.f32.gmra.mrb[0].mxu0 %v518
      %v585 = vpop.f32.mrb[0].mxu0
      %v586 = vadd.f32 0.0, %v585
      %v587 = vpop.f32.mrb[0].mxu0
      %588 = vdwg.mxu0
      %v589 = vcvt.f32.s32.to.zero.pseudo %v586
      %vm590 = vcmask 122880
      %591 = vst.msk [vmem:[%s171] sm:$0x1] %vm590, %v589
      %p592 = scmp.lt.s32.totalorder %s14, 1
      %s593 = scalar_select %p592, %s14, 1
      %s594 = scalar_lea.vmem %s3, %s593
      // Predicated region
      $region33: #{hubert_with_kmeans_forward.1} parent=31 // pred_check
        %p595 = pneg %p100
      $region34: #{hubert_with_kmeans_forward.1} parent=31 // pred_check_branch
        %597 = sbr.rel (%p595) target = $region36
      $region35: #{hubert_with_kmeans_forward.1} parent=31 // pred_region
        _
      $region36: #{hubert_with_kmeans_forward.1} parent=31 // pred_fallthru
        _
    $region32: #{hubert_with_kmeans_forward.1} parent=5 // pred_fallthru
      _
    %p598 = scmp.le.s32.totalorder 2, %s9
    // Predicated region
    $region37: #{hubert_with_kmeans_forward.1} parent=5 // pred_check
      %p599 = pneg %p598
    $region38: #{hubert_with_kmeans_forward.1} parent=5 // pred_check_branch
      %601 = sbr.rel (%p599) target = $region40
    $region39: #{hubert_with_kmeans_forward.1} parent=5 // pred_region
      %s602 = ssub.s32 %s9, 2
      // Predicated region
      $region41: #{hubert_with_kmeans_forward.1} parent=39 // pred_check
        %p603 = pneg %p106
      $region42: #{hubert_with_kmeans_forward.1} parent=39 // pred_check_branch
        %605 = sbr.rel (%p603) target = $region44
      $region43: #{hubert_with_kmeans_forward.1} parent=39 // pred_region
        %p606 = scmp.lt.s32.totalorder %s15, 1
        %s607 = scalar_select %p606, %s15, 1
        %s608 = scalar_lea.vmem %s3, %s607
      $region44: #{hubert_with_kmeans_forward.1} parent=39 // pred_fallthru
        _
    $region40: #{hubert_with_kmeans_forward.1} parent=5 // pred_fallthru
      _
  $region6: #{hubert_with_kmeans_forward.1} parent=0 // loop_footer
    %s13 = sadd.s32 1, %s9
  $region7: #{hubert_with_kmeans_forward.1} parent=0 // loop_footer_branch
    %8 = sbr.rel target = $region3
  $region8: #{hubert_with_kmeans_forward.1} parent=0 // loop_exit
    _

</llo_original>
